<compile_context>
chip_gen: v7x
topology: tpu7x:2x2x1
jax: 0.10.0
libtpu: 0.0.40
codegen_flags: <defaults>
</compile_context>

<pallas_src>
import numpy as np

import jax
import jax.numpy as jnp
from jax.experimental import pallas as pl
from jax.experimental.pallas import tpu as pltpu

NEG_SLOPE = 0.01          # nn.LeakyReLU default negative_slope
M_VALID = 250             # input_trace_length // 4
MP = 256                  # phase length padded to a multiple of 128 lanes


# ----------------------------------------------------------------------------
# The fused kernel
# ----------------------------------------------------------------------------
def _fused_kernel(xp_ref, mask_ref,
                  we1_ref, be1_ref, we2_ref, be2_ref, we3_ref, be3_ref, we4_ref, be4_ref,
                  wbnT_ref, wdecT_ref, bdec_ref,
                  wd1_ref, bd1_ref, wd2_ref, bd2_ref, wd3_ref, bd3_ref, wd4_ref, bd4_ref,
                  o_ref):
    f32 = jnp.float32
    mp = xp_ref.shape[-1]
    mask = mask_ref[...]                       # (1, MP) f32 {1.0 on lanes < 250, else 0}

    def leaky(a):
        return jnp.where(a >= 0.0, a, NEG_SLOPE * a)

    def conv_layer(x, w3_ref, b_ref, act=True):
        # x: (R_in, MP), zeros on lanes >= 250 (pad-lane invariant).
        # w3_ref: (3, R_out, R_in) stacked per lane-shift; b_ref: (R_out, 1).
        x_prev = pltpu.roll(x, shift=1, axis=1)        # paired with w3_ref[0]
        x_next = pltpu.roll(x, shift=mp - 1, axis=1)   # paired with w3_ref[2]
        acc = jnp.dot(w3_ref[0], x_prev, preferred_element_type=f32)
        acc = acc + jnp.dot(w3_ref[1], x, preferred_element_type=f32)
        acc = acc + jnp.dot(w3_ref[2], x_next, preferred_element_type=f32)
        acc = acc + b_ref[...]
        if act:
            acc = leaky(acc)
        return acc * mask                      # restore the pad-lane invariant

    def conv_layer_u0(x, w_ref, b_ref, act=True):
        acc = jnp.dot(w_ref[...], x, preferred_element_type=f32) + b_ref[...]
        if act:
            acc = leaky(acc)
        return acc * mask

    x0 = xp_ref[...]                           # (4B, MP), pad lanes already zero

    # ------------- Encoder (Conv1d layers as per-shift matmuls) -------------
    y1 = conv_layer(x0, we1_ref, be1_ref)      # Conv1d(1->8, k7, s2, p3)   -> (16B, MP)
    y2 = conv_layer(y1, we2_ref, be2_ref)      # Conv1d(8->4, k5, s2, p2)   -> (4B,  MP)
    y3 = conv_layer(y2, we3_ref, be3_ref)      # Conv1d(4->2, k3, s1, p1)   -> (2B,  MP)
    h = conv_layer_u0(y3, we4_ref, be4_ref)    # Conv1d(2->1, k1) + Flatten -> (B,   MP)

    # ------------- BottleNeck Linear + Decoder Linear on the MXU -------------
    z = jnp.dot(h, wbnT_ref[...], preferred_element_type=f32)               # (B, 3)
    d = jnp.dot(z, wdecT_ref[...], preferred_element_type=f32) + bdec_ref[...]  # (B, MP)

    # ------------- Decoder (ConvTranspose1d layers) -------------
    u1 = conv_layer_u0(d, wd1_ref, bd1_ref)    # ConvT(1->2, k1)                 -> (2B,  MP)
    u2 = conv_layer(u1, wd2_ref, bd2_ref)      # ConvT(2->4, k3, p1)             -> (4B,  MP)
    u3 = conv_layer(u2, wd3_ref, bd3_ref)      # ConvT(4->8, k5, s2, p2, op1)    -> (16B, MP)
    o_ref[...] = conv_layer(u3, wd4_ref, bd4_ref, act=False)  # ConvT(8->1, k7, s2, p3, op1)


# ----------------------------------------------------------------------------
# Roll-direction probe: makes the weight packing robust to the rotate
# direction convention of pltpu.roll (paired slab order is chosen accordingly).
# ----------------------------------------------------------------------------
def _roll_is_numpy_convention():
    def k(x_ref, o_ref):
        o_ref[...] = pltpu.roll(x_ref[...], shift=1, axis=1)

    x = jnp.tile(jnp.arange(MP, dtype=jnp.float32)[None, :], (8, 1))
    out = pl.pallas_call(
        k,
        out_shape=jax.ShapeDtypeStruct((8, MP), jnp.float32),
        in_specs=[pl.BlockSpec(memory_space=pltpu.MemorySpace.VMEM)],
        out_specs=pl.BlockSpec(memory_space=pltpu.MemorySpace.VMEM),
    )(x)
    # np.roll convention: out[m] == x[m - 1]  ->  out[1] == x[0].
    return bool(out[0, 1] == x[0, 0])


# ----------------------------------------------------------------------------
# Parameter packing (one-time, outside jit): polyphase tap algebra -> per-shift
# channel-mixing matrices with batch-diagonal blocks, plus bias columns.
# ----------------------------------------------------------------------------
def _as_np(a):
    return np.asarray(jax.device_get(a), dtype=np.float32)


def pack_params(params, batch, roll_like_numpy=True):
    B = batch
    order = (-1, 0, 1) if roll_like_numpy else (1, 0, -1)

    def stack(entries, rows_out, rows_in):
        mats = {u: np.zeros((rows_out * B, rows_in * B), np.float32) for u in (-1, 0, 1)}
        for ro, ri, u, val in entries:
            for b in range(B):
                mats[u][ro * B + b, ri * B + b] += val
        return np.stack([mats[u] for u in order], axis=0)

    def bias_col(per_row):
        return np.repeat(np.asarray(per_row, np.float32), B)[:, None]

    # ---------------- encoder ----------------
    # enc1: Conv1d(1->8, k7, s2, p3); in rows = 4 phases, out rows = 8ch x 2 phases
    w, b = map(_as_np, params["enc1"])
    ent = []
    for co in range(8):
        for r in range(2):
            for t in range(7):
                e = 2 * r + t - 3
                v = e % 4
                u = (e - v) // 4
                ent.append((co * 2 + r, v, u, w[co, 0, t]))
    we1 = stack(ent, 16, 4)
    be1 = bias_col([b[cr // 2] for cr in range(16)])

    # enc2: Conv1d(8->4, k5, s2, p2); in rows = 8ch x 2 phases, out rows = 4ch
    w, b = map(_as_np, params["enc2"])
    ent = []
    for co in range(4):
        for ci in range(8):
            for t in range(5):
                e = t - 2
                r = e % 2
                u = (e - r) // 2
                ent.append((co, ci * 2 + r, u, w[co, ci, t]))
    we2 = stack(ent, 4, 16)
    be2 = bias_col([b[c] for c in range(4)])

    # enc3: Conv1d(4->2, k3, s1, p1)
    w, b = map(_as_np, params["enc3"])
    ent = [(co, ci, t - 1, w[co, ci, t])
           for co in range(2) for ci in range(4) for t in range(3)]
    we3 = stack(ent, 2, 4)
    be3 = bias_col([b[c] for c in range(2)])

    # enc4: Conv1d(2->1, k1) -- single (u = 0) matrix
    w, b = map(_as_np, params["enc4"])
    we4 = np.zeros((1 * B, 2 * B), np.float32)
    for ci in range(2):
        for bb in range(B):
            we4[bb, ci * B + bb] = w[0, ci, 0]
    be4 = bias_col([b[0]])

    # ---------------- Linear layers ----------------
    wbn, bbn = map(_as_np, params["bottleneck"])     # (BN, 250), (BN,)
    wdec, bdec = map(_as_np, params["dec_lin"])      # (250, BN), (250,)
    assert wbn.shape[1] == M_VALID and wdec.shape[0] == M_VALID
    wbnT = np.zeros((MP, wbn.shape[0]), np.float32)
    wbnT[:M_VALID, :] = wbn.T
    wdecT = np.zeros((wdec.shape[1], MP), np.float32)
    wdecT[:, :M_VALID] = wdec.T
    bdec_eff = np.zeros((1, MP), np.float32)
    bdec_eff[0, :M_VALID] = bbn @ wdec.T + bdec      # fold bottleneck bias through dec Linear

    # ---------------- decoder ----------------
    # dec1: ConvT(1->2, k1) -- single (u = 0) matrix
    w, b = map(_as_np, params["dec1"])
    wd1 = np.zeros((2 * B, 1 * B), np.float32)
    for co in range(2):
        for bb in range(B):
            wd1[co * B + bb, bb] = w[0, co, 0]
    bd1 = bias_col([b[c] for c in range(2)])

    # dec2: ConvT(2->4, k3, s1, p1)
    w, b = map(_as_np, params["dec2"])
    ent = [(co, ci, 1 - t, w[ci, co, t])
           for co in range(4) for ci in range(2) for t in range(3)]
    wd2 = stack(ent, 4, 2)
    bd2 = bias_col([b[c] for c in range(4)])

    # dec3: ConvT(4->8, k5, s2, p2, op1); out rows = 8ch x 2 phases
    w, b = map(_as_np, params["dec3"])
    ent = []
    for co in range(8):
        for r in range(2):
            for ci in range(4):
                for t in range(r, 5, 2):
                    u = (2 + r - t) // 2
                    ent.append((co * 2 + r, ci, u, w[ci, co, t]))
    wd3 = stack(ent, 16, 4)
    bd3 = bias_col([b[cr // 2] for cr in range(16)])

    # dec4: ConvT(8->1, k7, s2, p3, op1); out rows = 4 output phases
    w, b = map(_as_np, params["dec4"])
    ent = []
    for v in range(4):
        for ci in range(8):
            for r in range(2):
                t0 = (3 + v - 2 * r) % 4
                for t in range(t0, 7, 4):
                    u = (3 + v - 2 * r - t) // 4
                    ent.append((v, ci * 2 + r, u, w[ci, 0, t]))
    wd4 = stack(ent, 4, 16)
    bd4 = bias_col([b[0]] * 4)

    mask = np.zeros((1, MP), np.float32)
    mask[0, :M_VALID] = 1.0

    to_j = lambda a: jnp.asarray(a, jnp.float32)
    return {
        "batch": B, "mask": to_j(mask),
        "we1": to_j(we1), "be1": to_j(be1), "we2": to_j(we2), "be2": to_j(be2),
        "we3": to_j(we3), "be3": to_j(be3), "we4": to_j(we4), "be4": to_j(be4),
        "wbnT": to_j(wbnT), "wdecT": to_j(wdecT), "bdec": to_j(bdec_eff),
        "wd1": to_j(wd1), "bd1": to_j(bd1), "wd2": to_j(wd2), "bd2": to_j(bd2),
        "wd3": to_j(wd3), "bd3": to_j(bd3), "wd4": to_j(wd4), "bd4": to_j(bd4),
    }


# ----------------------------------------------------------------------------
# Forward wrapper (mirrors TraceTriggerModel3_NF.forward; x is a sequence, x[0])
# ----------------------------------------------------------------------------
def trace_trigger_forward(packed, x, aux=None):
    x0 = x[0].astype(jnp.float32)          # (.to(device) is a no-op in JAX)
    B, C, L = x0.shape
    assert C == 1 and L == 4 * M_VALID and B == packed["batch"]

    # polyphase split: row (v*B + b) holds x0[b, 0, 4m + v]; pad 250 -> 256 lanes.
    xp = jnp.transpose(x0.reshape(B, M_VALID, 4), (2, 0, 1)).reshape(4 * B, M_VALID)
    xp = jnp.pad(xp, ((0, 0), (0, MP - M_VALID)))

    op_keys = ("mask", "we1", "be1", "we2", "be2", "we3", "be3", "we4", "be4",
               "wbnT", "wdecT", "bdec", "wd1", "bd1", "wd2", "bd2", "wd3", "bd3",
               "wd4", "bd4")
    operands = (xp,) + tuple(packed[k] for k in op_keys)

    out = pl.pallas_call(
        _fused_kernel,
        out_shape=jax.ShapeDtypeStruct((4 * B, MP), jnp.float32),
        in_specs=[pl.BlockSpec(memory_space=pltpu.MemorySpace.VMEM)] * len(operands),
        out_specs=pl.BlockSpec(memory_space=pltpu.MemorySpace.VMEM),
        cost_estimate=pl.CostEstimate(flops=1_700_000, transcendentals=0,
                                      bytes_accessed=80_000),
    )(*operands)

    # interleave the 4 output phases back into a (B, 1, L) trace
    out = out[:, :M_VALID].reshape(4, B, M_VALID)
    return jnp.transpose(out, (1, 2, 0)).reshape(B, 1, L)


# ----------------------------------------------------------------------------
# Deterministic synthetic parameters (shapes from TraceTriggerModel3_NF.__init__)
# ----------------------------------------------------------------------------
def init_params(key, input_channels=1, output_channels=1, bottleneck=3, trace_len=1000):
    flat = trace_len // 4
    specs = {
        "enc1": ("conv", 8, input_channels, 7),
        "enc2": ("conv", 4, 8, 5),
        "enc3": ("conv", 2, 4, 3),
        "enc4": ("conv", 1, 2, 1),
        "bottleneck": ("linear", bottleneck, flat),
        "dec_lin": ("linear", flat, bottleneck),
        "dec1": ("convT", 1, 2, 1),
        "dec2": ("convT", 2, 4, 3),
        "dec3": ("convT", 4, 8, 5),
        "dec4": ("convT", 8, output_channels, 7),
    }
    params = {}
    keys = jax.random.split(key, 2 * len(specs))
    for i, (name, spec) in enumerate(specs.items()):
        kw, kb = keys[2 * i], keys[2 * i + 1]
        if spec[0] == "conv":
            _, cout, cin, k = spec
            fan_in, wshape, bshape = cin * k, (cout, cin, k), (cout,)
        elif spec[0] == "convT":
            _, cin, cout, k = spec
            fan_in, wshape, bshape = cout * k, (cin, cout, k), (cout,)
        else:
            _, out_f, in_f = spec
            fan_in, wshape, bshape = in_f, (out_f, in_f), (out_f,)
        bound = 1.0 / (fan_in ** 0.5)
        params[name] = (
            jax.random.uniform(kw, wshape, jnp.float32, -bound, bound),
            jax.random.uniform(kb, bshape, jnp.float32, -bound, bound),
        )
    return params


# ----------------------------------------------------------------------------
# Pure-JAX reference (no Pallas) for the correctness check
# ----------------------------------------------------------------------------
def _ref_mm(x, w, b, act):
    y = jax.lax.dot(x, w, precision=jax.lax.Precision.HIGHEST) + b.reshape(1, -1)
    return jnp.where(y >= 0.0, y, NEG_SLOPE * y) if act else y


def _ref_im2col(xp, K, stride):
    B, Cin, Lp = xp.shape
    Lout = (Lp - K) // stride + 1
    idx = jnp.arange(Lout)[:, None] * stride + jnp.arange(K)[None, :]
    patches = jnp.take(xp, idx, axis=2)                     # (B, Cin, Lout, K)
    patches = patches.transpose(0, 2, 1, 3).reshape(B * Lout, Cin * K)
    return patches, Lout


def _ref_conv1d(x, w, b, stride, pad_l, pad_r, act):
    B, Cin, L = x.shape
    Cout, _, K = w.shape
    xp = jnp.pad(x, ((0, 0), (0, 0), (pad_l, pad_r)))
    patches, Lout = _ref_im2col(xp, K, stride)
    out = _ref_mm(patches, w.reshape(Cout, Cin * K).T, b, act)
    return out.reshape(B, Lout, Cout).transpose(0, 2, 1)


def _ref_conv_transpose1d(x, w, b, stride, padding, output_padding, act):
    B, Cin, L = x.shape
    _, Cout, K = w.shape
    if stride > 1:
        Li = (L - 1) * stride + 1
        xz = jnp.zeros((B, Cin, Li), x.dtype).at[:, :, ::stride].set(x)
    else:
        xz = x
    w_conv = jnp.flip(w, axis=-1).transpose(1, 0, 2)
    pad_l = K - 1 - padding
    pad_r = K - 1 - padding + output_padding
    return _ref_conv1d(xz, w_conv, b, 1, pad_l, pad_r, act)


def _reference_forward(params, x):
    x = x[0]
    B = x.shape[0]
    h = _ref_conv1d(x, *params["enc1"], stride=2, pad_l=3, pad_r=3, act=True)
    h = _ref_conv1d(h, *params["enc2"], stride=2, pad_l=2, pad_r=2, act=True)
    h = _ref_conv1d(h, *params["enc3"], stride=1, pad_l=1, pad_r=1, act=True)
    h = _ref_conv1d(h, *params["enc4"], stride=1, pad_l=0, pad_r=0, act=True)
    h = h.reshape(B, -1)
    h = _ref_mm(h, params["bottleneck"][0].T, params["bottleneck"][1], act=False)
    h = _ref_mm(h, params["dec_lin"][0].T, params["dec_lin"][1], act=False)
    h = h.reshape(B, 1, -1)
    h = _ref_conv_transpose1d(h, *params["dec1"], stride=1, padding=0, output_padding=0, act=True)
    h = _ref_conv_transpose1d(h, *params["dec2"], stride=1, padding=1, output_padding=0, act=True)
    h = _ref_conv_transpose1d(h, *params["dec3"], stride=2, padding=2, output_padding=1, act=True)
    h = _ref_conv_transpose1d(h, *params["dec4"], stride=2, padding=3, output_padding=1, act=False)
    return h


# ----------------------------------------------------------------------------
if __name__ == "__main__":
    key = jax.random.PRNGKey(0)
    pkey, xkey = jax.random.split(key)
    params = init_params(pkey)

    B = 2
    x0 = jax.random.normal(xkey, (B, 1, 1000), jnp.float32)
    x = (x0,)                           # the module's forward indexes x[0]

    roll_np = _roll_is_numpy_convention()
    packed = pack_params(params, batch=B, roll_like_numpy=roll_np)   # one-time packing

    fwd = jax.jit(lambda xx: trace_trigger_forward(packed, xx))
    out = jax.block_until_ready(fwd(x))
    assert out.shape == (B, 1, 1000), out.shape
    assert bool(jnp.all(jnp.isfinite(out)))

    ref = _reference_forward(params, x)
    err = float(jnp.max(jnp.abs(out - ref)))
    scale = float(jnp.max(jnp.abs(ref))) + 1e-6
    assert err <= 1e-3 + 1e-2 * scale, (err, scale)

    print("KERNEL_OK")
</pallas_src>

<mosaic_0001>
module attributes {stable_mosaic.version = 11 : i64} {
  func.func @k(%arg0: memref<8x256xf32, #tpu.memory_space<vmem>>, %arg1: memref<8x256xf32, #tpu.memory_space<vmem>>) attributes {dimension_semantics = [], scalar_prefetch = 0 : i64, scratch_operands = 0 : i64, tpu.core_type = #tpu.core_type<tc>} {
    %c0 = arith.constant 0 : index
    %c0_0 = arith.constant 0 : index
    %0 = vector.load %arg0[%c0, %c0_0] : memref<8x256xf32, #tpu.memory_space<vmem>>, vector<8x256xf32>
    %c1_i32 = arith.constant 1 : i32
    %1 = tpu.dynamic_rotate %0 by %c1_i32 dim 1 : vector<8x256xf32>, i32 -> vector<8x256xf32>
    %c0_1 = arith.constant 0 : index
    %c0_2 = arith.constant 0 : index
    %2 = vector.load %arg1[%c0_1, %c0_2] : memref<8x256xf32, #tpu.memory_space<vmem>>, vector<8x256xf32>
    tpu.vector_store %arg1[%c0_1, %c0_2], %1 {strides = array<i32>} : memref<8x256xf32, #tpu.memory_space<vmem>>, vector<8x256xf32>,
    return
  }
}

</mosaic_0001>

<llo_original>
// kernel: tpu_custom_call.1
$region0: #{tpu_custom_call.1}
  #allocation0 [shape = 'u32[]', space=smem, size = 0x4, offset = 0x4, fixed_abs, tag = 'smem constant byte address 0x4 - core index']
  #allocation1 [shape = 'u32[144,128]{1,0:T(1,128)}', space=vmem, size = 0x12000, scoped, tag = 'internal scratch']
  %s0 = inlined_call_operand.hbm [shape: f32[8,256], index: 0, kind: input, shape index: {}]
  %s1 = inlined_call_operand.hbm [shape: f32[8,256], index: 1, kind: output, shape index: {}]
  %s2 = sld [smem:[#allocation0]]
  $region18: #{tpu_custom_call.1} parent=0
    _
  %s4 = ssub.s32 1, %s2
  %s5 = scalar_select 0, %s4, %s2
  $region1: #{tpu_custom_call.1} parent=0
    #allocation2 [shape = 'u8[8192]{0}', space=vmem, size = 0x2000, scoped, tag = 'input window, operand 0, single buffered']
    #allocation3 [shape = 's32[1]{0}', space=sflag, size = 0x4, scoped, tag = 'scoped memory for tpu_custom_call.1']
    #allocation4 [shape = 's32[1]{0}', space=sflag, size = 0x4, scoped, tag = 'scoped memory for tpu_custom_call.1']
    #allocation5 [shape = 'u8[8192]{0}', space=vmem, size = 0x2000, scoped, tag = 'output window, operand 0, single buffered']
    %6 = vsyncpa [#allocation3], 0
    %7 = vsyncpa [#allocation4], 0
    // Predicated region
    $region2: #{tpu_custom_call.1} parent=1 // pred_check
      _
    $region3: #{tpu_custom_call.1} parent=1 // pred_check_branch
      %9 = sbr.rel (0) target = $region5
    $region4: #{tpu_custom_call.1} parent=1 // pred_region
      %s11 = ssub.s32 256, 256
      %12 = vsyncadd [#allocation3], %s11
      %s14 = sshll.u32 [#allocation2], 4
      %s15 = int_to_ptr.vmem [resolvable:$true] %s14
      %17 = dma.hbm_to_vmem [thread:$0]  %s0, 256, %s15, [#allocation3]
    $region5: #{tpu_custom_call.1} parent=1 // pred_fallthru
      _
    // Predicated region
    $region6: #{tpu_custom_call.1} parent=1 // pred_check
      _
    $region7: #{tpu_custom_call.1} parent=1 // pred_check_branch
      %19 = sbr.rel (0) target = $region9
    $region8: #{tpu_custom_call.1} parent=1 // pred_region
      %20 = dma.done [#allocation3], 256
    $region9: #{tpu_custom_call.1} parent=1 // pred_fallthru
      _
    %v21 = vld [vmem:[#allocation2] sm:$0xff]
    %v22 = vld [vmem:[#allocation2 + $0x8] sm:$0xff]
    %23 = vrot.lane.b32.xlu0 %v21, 1
    %v24 = vpop.permute.xlu0 %23
    %25 = vrot.lane.b32.xlu0 %v22, 1
    %v26 = vpop.permute.xlu0 %25
    %v27 = vlaneseq
    %v28 = vand.u32 %v27, 127
    %vm29 = vcmp.lt.s32.totalorder %v28, 1
    %v30 = vsel %vm29, %v24, %v26
    %v31 = vsel %vm29, %v26, %v24
    %32 = vst [vmem:[#allocation5] sm:$0xff] %v31
    %33 = vst [vmem:[#allocation5 + $0x8] sm:$0xff] %v30
    // Predicated region
    $region10: #{tpu_custom_call.1} parent=1 // pred_check
      _
    $region11: #{tpu_custom_call.1} parent=1 // pred_check_branch
      %35 = sbr.rel (0) target = $region13
    $region12: #{tpu_custom_call.1} parent=1 // pred_region
      %s37 = ssub.s32 256, 256
      %38 = vsyncadd [#allocation4], %s37
      %s40 = sshll.u32 [#allocation5], 4
      %s41 = int_to_ptr.vmem [resolvable:$true] %s40
      %43 = dma.vmem_to_hbm [thread:$0]  %s41, 256, %s1, [#allocation4]
    $region13: #{tpu_custom_call.1} parent=1 // pred_fallthru
      _
    // Predicated region
    $region14: #{tpu_custom_call.1} parent=1 // pred_check
      _
    $region15: #{tpu_custom_call.1} parent=1 // pred_check_branch
      %45 = sbr.rel (0) target = $region17
    $region16: #{tpu_custom_call.1} parent=1 // pred_region
      %46 = dma.done [#allocation4], 256
    $region17: #{tpu_custom_call.1} parent=1 // pred_fallthru
      _
    %47 = vsyncpa [#allocation3], 1
    %48 = vsyncpa [#allocation4], 1

</llo_original>
